<compile_context>
chip_gen: v7x
topology: tpu7x:2x2x1
jax: 0.10.0
libtpu: 0.0.40
codegen_flags: <defaults>
</compile_context>

<pallas_src>
from math import tau, log2
from functools import partial

import jax
import jax.numpy as jnp
from jax.experimental import pallas as pl
from jax.experimental.pallas import tpu as pltpu


def _round_up(x: int, m: int) -> int:
    return ((x + m - 1) // m) * m


def _vmem_estimate(tile_b: int, out_dim: int, itemsize: int) -> int:
    half = out_dim // 2
    out_blk = tile_b * out_dim * itemsize          # output block
    in_blk = tile_b * 128 * 4                      # (tile_b, 1) f32 lane-padded to 128 lanes
    temps = 3 * tile_b * half * 4                  # theta + sin + cos f32 intermediates
    return 2 * (out_blk + in_blk) + temps          # x2 for double buffering


def _sinusoidal_kernel(t_ref, o_ref, *, half, lo, step, split_store):
    # t_ref: (tile_b, 1) f32, o_ref: (tile_b, 2*half) out_dtype.
    #
    # Frequency table built in-kernel from trace-time scalars (no input DMA):
    #   exponent_j = lo + j*step    == linspace(log2(min_wl), log2(max_wl), half)
    #   freq_j     = tau * 2**(-exponent_j)
    idx = jax.lax.broadcasted_iota(jnp.int32, (1, half), 1).astype(jnp.float32)
    exponent = lo + idx * step                     # (1, half) f32
    freq = tau * jnp.exp2(-exponent)               # single EUP exp2, no extra mul chain

    theta = t_ref[...] * freq                      # (tile_b, half) f32 outer product

    if split_store:
        # half is a multiple of 128: two lane-aligned slab stores, no concat temp.
        o_ref[:, :half] = jnp.sin(theta).astype(o_ref.dtype)
        o_ref[:, half:] = jnp.cos(theta).astype(o_ref.dtype)
    else:
        emb = jnp.concatenate([jnp.sin(theta), jnp.cos(theta)], axis=-1)
        o_ref[...] = emb.astype(o_ref.dtype)


def sinusoidal_embedding(t, out_dim, *, min_wavelength=4.0,
                         max_wavelength=10000.0 / tau,
                         out_dtype=jnp.float32, tile_b=None):
    """JAX/Pallas equivalent of SinusoidalEmbedding.forward.

    t: (B,) array of diffusion timepoints.
    returns: (B, out_dim) array = [sin(t*freq), cos(t*freq)].
    """
    assert t.ndim == 1
    if out_dim % 2 != 0:
        raise ValueError(f"output dimension must be even, not {out_dim}")
    if out_dim < 2:
        raise ValueError(f"output dimension must be greater than 1, not {out_dim}")

    B = t.shape[0]
    half = out_dim // 2
    itemsize = jnp.dtype(out_dtype).itemsize

    # Trace-time scalars defining the torch.logspace(base=2) frequency table.
    lo = log2(min_wavelength)
    hi = log2(max_wavelength)
    step = (hi - lo) / (half - 1) if half > 1 else 0.0

    # --- Tile sizing --------------------------------------------------------
    if tile_b is None:
        # Target ~4 MiB output block -> per-step overhead amortized to <10%.
        tile_b = max(8, (4 << 20) // max(out_dim * itemsize, 1))
        tile_b = min(tile_b, 8192)
    tile_b = min(int(tile_b), _round_up(max(B, 1), 8))
    tile_b = max(8, _round_up(tile_b, 8))

    # Keep the double-buffered footprint (output + lane-padded input + temps)
    # within a budget that is safe even on v7x (64 MiB physical VMEM).
    VMEM_BUDGET = 40 << 20
    while tile_b > 8 and _vmem_estimate(tile_b, out_dim, itemsize) > VMEM_BUDGET:
        tile_b = max(8, _round_up(tile_b // 2, 8))
    est = _vmem_estimate(tile_b, out_dim, itemsize)
    vmem_limit = int(min(max(est + (8 << 20), 32 << 20), 48 << 20))

    n_tiles = pl.cdiv(B, tile_b)
    split_store = (half % 128 == 0)

    t2d = t.astype(jnp.float32).reshape(B, 1)

    cost = pl.CostEstimate(
        flops=2 * B * half,                 # outer product t*freq
        transcendentals=B * out_dim,        # one sin + one cos per element
        bytes_accessed=B * 4 + B * out_dim * itemsize,
    )

    return pl.pallas_call(
        partial(_sinusoidal_kernel, half=half, lo=lo, step=step,
                split_store=split_store),
        out_shape=jax.ShapeDtypeStruct((B, out_dim), out_dtype),
        grid=(n_tiles,),
        in_specs=[pl.BlockSpec((tile_b, 1), lambda i: (i, 0))],
        out_specs=pl.BlockSpec((tile_b, out_dim), lambda i: (i, 0)),
        compiler_params=pltpu.CompilerParams(
            dimension_semantics=("parallel",),   # shard batch tiles across TCs
            vmem_limit_bytes=vmem_limit),
        cost_estimate=cost,
    )(t2d)


def _reference(t, out_dim, *, min_wavelength=4.0, max_wavelength=10000.0 / tau):
    # Pure-JAX reference matching the PyTorch module.
    half = out_dim // 2
    exponents = jnp.linspace(log2(min_wavelength), log2(max_wavelength), half,
                             dtype=jnp.float32)
    freq = tau / jnp.exp2(exponents)
    theta = jnp.outer(t.astype(jnp.float32), freq)
    return jnp.concatenate([jnp.sin(theta), jnp.cos(theta)], axis=-1)


if __name__ == "__main__":
    k1, k2 = jax.random.split(jax.random.PRNGKey(0))

    # --- Small single-tile case, lane-aligned halves (split-store path) ----
    OUT_DIM = 256  # half = 128
    B = 8
    t = jax.random.uniform(k1, (B,), dtype=jnp.float32, minval=0.0, maxval=100.0)
    emb = jax.block_until_ready(sinusoidal_embedding(t, OUT_DIM))
    ref = _reference(t, OUT_DIM)
    assert emb.shape == (B, OUT_DIM)
    assert emb.dtype == jnp.float32
    assert jnp.allclose(emb, ref, atol=2e-4, rtol=2e-4)

    # --- Multi-tile ragged grid (B not a multiple of tile_b): exercises the
    #     padded-read / masked-writeback path of the non-divisible grid. -----
    B2 = 200
    t2 = jax.random.uniform(k2, (B2,), dtype=jnp.float32, minval=0.0, maxval=100.0)
    emb2 = jax.block_until_ready(sinusoidal_embedding(t2, OUT_DIM, tile_b=64))
    ref2 = _reference(t2, OUT_DIM)
    assert emb2.shape == (B2, OUT_DIM)
    assert jnp.allclose(emb2, ref2, atol=2e-4, rtol=2e-4)

    # --- Non-lane-aligned half (fallback concat path): out_dim=128, half=64 -
    emb3 = jax.block_until_ready(sinusoidal_embedding(t2, 128, tile_b=64))
    ref3 = _reference(t2, 128)
    assert jnp.allclose(emb3, ref3, atol=2e-4, rtol=2e-4)

    # --- Optional bf16 output (halves HBM writeback; useful on v5e) --------
    emb_bf16 = jax.block_until_ready(
        sinusoidal_embedding(t, OUT_DIM, out_dtype=jnp.bfloat16))
    assert emb_bf16.dtype == jnp.bfloat16
    assert jnp.allclose(emb_bf16.astype(jnp.float32), ref, atol=2e-2, rtol=2e-2)

    print("KERNEL_OK")
</pallas_src>

<mosaic_0001>
module attributes {stable_mosaic.version = 11 : i64} {
  func.func @_sinusoidal_kernel(%arg0: i32, %arg1: memref<8x1xf32, #tpu.memory_space<vmem>>, %arg2: memref<8x256xf32, #tpu.memory_space<vmem>>) attributes {dimension_semantics = [#tpu.dimension_semantics<parallel>], iteration_bounds = array<i64: 1>, scalar_prefetch = 0 : i64, scratch_operands = 0 : i64, tpu.core_type = #tpu.core_type<tc>, window_params = [{transform_indices = @transform_0, window_bounds = array<i64: 8, 1>}, {transform_indices = @transform_1, window_bounds = array<i64: 8, 256>}]} {
    %0 = tpu.iota {dimensions = array<i32: 1>} : vector<1x128xi32>
    %1 = arith.sitofp %0 : vector<1x128xi32> to vector<1x128xf32>
    %cst = arith.constant 6.800170e-02 : f32
    %2 = vector.broadcast %cst : f32 to vector<1x128xf32>
    %3 = arith.mulf %1, %2 : vector<1x128xf32>
    %cst_0 = arith.constant 2.000000e+00 : f32
    %4 = vector.broadcast %cst_0 : f32 to vector<1x128xf32>
    %5 = arith.addf %4, %3 : vector<1x128xf32>
    %cst_1 = arith.constant 0.000000e+00 : f32
    %6 = vector.broadcast %cst_1 : f32 to vector<1x128xf32>
    %7 = arith.subf %6, %5 : vector<1x128xf32>
    %8 = math.exp2 %7 : vector<1x128xf32>
    %cst_2 = arith.constant 6.28318548 : f32
    %9 = vector.broadcast %cst_2 : f32 to vector<1x128xf32>
    %10 = arith.mulf %9, %8 : vector<1x128xf32>
    %c0 = arith.constant 0 : index
    %c0_3 = arith.constant 0 : index
    %11 = vector.load %arg1[%c0, %c0_3] : memref<8x1xf32, #tpu.memory_space<vmem>>, vector<8x1xf32>
    %12 = vector.broadcast %11 : vector<8x1xf32> to vector<8x128xf32>
    %13 = vector.broadcast %10 : vector<1x128xf32> to vector<8x128xf32>
    %14 = arith.mulf %12, %13 : vector<8x128xf32>
    %15 = math.sin %14 : vector<8x128xf32>
    %c0_4 = arith.constant 0 : index
    %c0_5 = arith.constant 0 : index
    %16 = vector.load %arg2[%c0_4, %c0_5] : memref<8x256xf32, #tpu.memory_space<vmem>>, vector<8x128xf32>
    tpu.vector_store %arg2[%c0_4, %c0_5], %15 {strides = array<i32>} : memref<8x256xf32, #tpu.memory_space<vmem>>, vector<8x128xf32>,
    %17 = math.cos %14 : vector<8x128xf32>
    %c0_6 = arith.constant 0 : index
    %c128 = arith.constant 128 : index
    %18 = vector.load %arg2[%c0_6, %c128] : memref<8x256xf32, #tpu.memory_space<vmem>>, vector<8x128xf32>
    tpu.vector_store %arg2[%c0_6, %c128], %17 {strides = array<i32>} : memref<8x256xf32, #tpu.memory_space<vmem>>, vector<8x128xf32>,
    return
  }
  func.func @transform_0(%arg0: i32) -> (i32, i32) {
    %c0_i32 = arith.constant 0 : i32
    %c0_i32_0 = arith.constant 0 : i32
    return %arg0, %c0_i32 : i32, i32
  }
  func.func @transform_1(%arg0: i32) -> (i32, i32) {
    %c0_i32 = arith.constant 0 : i32
    %c0_i32_0 = arith.constant 0 : i32
    return %arg0, %c0_i32 : i32, i32
  }
}

</mosaic_0001>

<llo_original>
// kernel: tpu_custom_call.1
$region0: #{tpu_custom_call.1}
  #allocation0 [shape = 'u32[]', space=smem, size = 0x4, offset = 0x4, fixed_abs, tag = 'smem constant byte address 0x4 - core index']
  #allocation1 [shape = 'u32[144,128]{1,0:T(1,128)}', space=vmem, size = 0x12000, scoped, tag = 'internal scratch']
  %s0 = inlined_call_operand.vmem [shape: f32[8,1], index: 0, kind: input, shape index: {}]
  %s1 = inlined_call_operand.hbm [shape: f32[8,256], index: 1, kind: output, shape index: {}]
  %s2 = sld [smem:[#allocation0]]
  $region14: #{tpu_custom_call.1} parent=0
    _
  %s4 = ssub.s32 1, %s2
  %s5 = scalar_select 0, %s4, %s2
  $region1: #{tpu_custom_call.1} parent=0
    #allocation2 [shape = 'u8[8192]{0}', space=vmem, size = 0x2000, scoped, tag = 'output window, operand 0, single buffered']
    #allocation3 [shape = 's32[1]{0}', space=sflag, size = 0x4, scoped, tag = 'scoped memory for tpu_custom_call.1']
    %6 = vsyncpa [#allocation3], 0
    // Predicated region
    $region2: #{tpu_custom_call.1} parent=1 // pred_check
      _
    $region3: #{tpu_custom_call.1} parent=1 // pred_check_branch
      %8 = sbr.rel (0) target = $region5
    $region4: #{tpu_custom_call.1} parent=1 // pred_region
      _
    $region5: #{tpu_custom_call.1} parent=1 // pred_fallthru
      _
    %v9 = vlaneseq
    %v10 = vand.u32 %v9, 127
    %v11 = vcvt.s32.f32 %v10
    %v12 = vmul.f32 %v11, 0.0680017
    %v13 = vadd.f32 %v12, 2.0
    %v14 = vsub.f32 0.0, %v13
    %v15 = vpow.pop %v14
    %v16 = vmul.f32 %v15, 6.2831855
    %v17 = vld [vmem:[%s0] sm:$0xff]
    %19 = vset.pattern.permute.xlu0 0
    %20 = vperm.xlu0 %19, %v17
    %v21 = vpop.permute.xlu0 %20
    %v23 = vmul.f32 %v21, %v16
    %v24 = vand.u32 2147483647, %v23
    %vm25 = vcmp.le.f32.partialorder %v24, 0.7853982
    %vm26 = vcmp.lt.s32.totalorder %v23, 0
    %v27 = vand.u32 %v23, 2139095040
    %v28 = vshrl.u32 %v27, 23
    %v29 = vsub.s32 %v28, 127
    %v30 = vand.u32 2147483647, %v23
    %v31 = vand.u32 %v30, 8388607
    %v32 = vor.u32 %v31, 8388608
    %v33 = vsub.s32 0, %v32
    %v34 = vadd.s32 %v29, 1
    %vm35 = vcmp.gt.s32.totalorder %v34, 0
    %v36 = vsel %vm35, %v34, 0
    %v37 = vshrl.u32 %v36, 5
    %v38 = vand.u32 %v36, 31
    %v39 = vsub.s32 32, %v38
    %v40 = vshrl.u32 683565275, %v39
    %v41 = vshll.u32 683565275, %v38
    %v42 = vshrl.u32 2475754826, %v39
    %v43 = vor.u32 %v41, %v42
    %v44 = vshll.u32 2475754826, %v38
    %v45 = vshrl.u32 2131351028, %v39
    %v46 = vor.u32 %v44, %v45
    %v47 = vshll.u32 2131351028, %v38
    %v48 = vshrl.u32 2102212464, %v39
    %v49 = vor.u32 %v47, %v48
    %v50 = vshll.u32 2102212464, %v38
    %v51 = vshrl.u32 920167782, %v39
    %v52 = vor.u32 %v50, %v51
    %v53 = vshll.u32 920167782, %v38
    %v54 = vshrl.u32 1326507024, %v39
    %v55 = vor.u32 %v53, %v54
    %vm56 = vcmp.lt.s32.totalorder %v37, 1
    %vm57 = vcmp.lt.s32.totalorder %v37, 2
    %vm58 = vcmp.lt.s32.totalorder %v37, 3
    %vm59 = vcmp.lt.s32.totalorder %v37, 4
    %v60 = vsel %vm56, %v40, %v43
    %v61 = vsel %vm59, %v49, 2102212464
    %v62 = vsel %vm58, %v46, %v61
    %v63 = vsel %vm57, %v60, %v62
    %v64 = vsel %vm56, %v43, %v46
    %v65 = vsel %vm59, %v52, 920167782
    %v66 = vsel %vm58, %v49, %v65
    %v67 = vsel %vm57, %v64, %v66
    %v68 = vsel %vm56, %v46, %v49
    %v69 = vsel %vm59, %v55, 1326507024
    %v70 = vsel %vm58, %v52, %v69
    %v71 = vsel %vm57, %v68, %v70
    %v72 = vshll.u32 %v32, 8
    %v73 = vmul.u32.u64.compose %v72, %v71
    %v74 = vextract.low.u32 %v73
    %v75 = vextract.high.u32 %v73
    %v76 = vmul.u32.u64.compose %v72, %v67
    %v77 = vextract.low.u32 %v76
    %v78 = vextract.high.u32 %v76
    %v79 = vmul.u32 %v72, %v63
    %v80 = vadd.s32 %v75, %v77
    %vm81 = vc.u32 %v75, %v77
    %v82 = vadd.s32 %v78, 1
    %v83 = vsel %vm81, %v82, %v78
    %v84 = vadd.s32 %v79, %v83
    %v85 = vadd.s32 %v84, 536870912
    %v86 = vshrl.u32 %v85, 30
    %v87 = vshll.u32 %v86, 30
    %v88 = vsub.s32 %v84, %v87
    %vm89 = vcmp.lt.s32.totalorder %v88, 0
    %v90 = vsub.s32 0, %v88
    %v91 = vsel %vm89, %v90, %v88
    %v92 = vclz %v91
    %v93 = vsub.s32 %v92, 2
    %vm94 = vcmp.gt.s32.totalorder 0, %v93
    %v95 = vsel %vm94, 0, %v93
    %v96 = vsub.s32 32, %v95
    %v97 = vshll.u32 %v88, %v95
    %v98 = vshrl.u32 %v80, %v96
    %v99 = vor.u32 %v97, %v98
    %v100 = vsub.s32 4294967266, %v95
    %v101 = vadd.s32 %v100, 127
    %v102 = vshll.u32 %v101, 23
    %v103 = vor.u32 4788187, %v102
    %v104 = vand.u32 2147483647, %v103
    %v106 = vcvt.s32.f32 %v99
    %v107 = vmul.f32 %v106, %v104
    %v108 = vxor.u32 %v107, 2147483648
    %v109 = vsel %vm26, %v108, %v107
    %v110 = vsub.s32 4, %v86
    %v111 = vsel %vm26, %v110, %v86
    %v112 = vsel %vm25, %v23, %v109
    %v113 = vsel %vm25, 0, %v111
    %v114 = vcosq.f32.pop %v112
    %v115 = vsinq.f32.pop %v112
    %vm116 = vweird.f32 %v23
    %v117 = vadd.s32 %v113, 3
    %v118 = vand.u32 %v117, 3
    %vm119 = vcmp.lt.s32.totalorder %v118, 2
    %vm120 = vcmp.eq.s32.totalorder %v118, 0
    %v121 = vxor.u32 %v115, 2147483648
    %v122 = vsel %vm120, %v114, %v121
    %vm123 = vcmp.eq.s32.totalorder %v118, 2
    %v124 = vxor.u32 %v114, 2147483648
    %v125 = vsel %vm123, %v124, %v115
    %v126 = vsel %vm119, %v122, %v125
    %v127 = vsel %vm116, nan, %v126
    %128 = vst [vmem:[#allocation2] sm:$0xff] %v127
    %v129 = vand.u32 2147483647, %v23
    %vm130 = vcmp.le.f32.partialorder %v129, 0.7853982
    %vm131 = vcmp.lt.s32.totalorder %v23, 0
    %v132 = vand.u32 %v23, 2139095040
    %v133 = vshrl.u32 %v132, 23
    %v134 = vsub.s32 %v133, 127
    %v135 = vand.u32 2147483647, %v23
    %v136 = vand.u32 %v135, 8388607
    %v137 = vor.u32 %v136, 8388608
    %v138 = vsub.s32 0, %v137
    %v139 = vadd.s32 %v134, 1
    %vm140 = vcmp.gt.s32.totalorder %v139, 0
    %v141 = vsel %vm140, %v139, 0
    %v142 = vshrl.u32 %v141, 5
    %v143 = vand.u32 %v141, 31
    %v144 = vsub.s32 32, %v143
    %v145 = vshrl.u32 683565275, %v144
    %v146 = vshll.u32 683565275, %v143
    %v147 = vshrl.u32 2475754826, %v144
    %v148 = vor.u32 %v146, %v147
    %v149 = vshll.u32 2475754826, %v143
    %v150 = vshrl.u32 2131351028, %v144
    %v151 = vor.u32 %v149, %v150
    %v152 = vshll.u32 2131351028, %v143
    %v153 = vshrl.u32 2102212464, %v144
    %v154 = vor.u32 %v152, %v153
    %v155 = vshll.u32 2102212464, %v143
    %v156 = vshrl.u32 920167782, %v144
    %v157 = vor.u32 %v155, %v156
    %v158 = vshll.u32 920167782, %v143
    %v159 = vshrl.u32 1326507024, %v144
    %v160 = vor.u32 %v158, %v159
    %vm161 = vcmp.lt.s32.totalorder %v142, 1
    %vm162 = vcmp.lt.s32.totalorder %v142, 2
    %vm163 = vcmp.lt.s32.totalorder %v142, 3
    %vm164 = vcmp.lt.s32.totalorder %v142, 4
    %v165 = vsel %vm161, %v145, %v148
    %v166 = vsel %vm164, %v154, 2102212464
    %v167 = vsel %vm163, %v151, %v166
    %v168 = vsel %vm162, %v165, %v167
    %v169 = vsel %vm161, %v148, %v151
    %v170 = vsel %vm164, %v157, 920167782
    %v171 = vsel %vm163, %v154, %v170
    %v172 = vsel %vm162, %v169, %v171
    %v173 = vsel %vm161, %v151, %v154
    %v174 = vsel %vm164, %v160, 1326507024
    %v175 = vsel %vm163, %v157, %v174
    %v176 = vsel %vm162, %v173, %v175
    %v177 = vshll.u32 %v137, 8
    %v178 = vmul.u32.u64.compose %v177, %v176
    %v179 = vextract.low.u32 %v178
    %v180 = vextract.high.u32 %v178
    %v181 = vmul.u32.u64.compose %v177, %v172
    %v182 = vextract.low.u32 %v181
    %v183 = vextract.high.u32 %v181
    %v184 = vmul.u32 %v177, %v168
    %v185 = vadd.s32 %v180, %v182
    %vm186 = vc.u32 %v180, %v182
    %v187 = vadd.s32 %v183, 1
    %v188 = vsel %vm186, %v187, %v183
    %v189 = vadd.s32 %v184, %v188
    %v190 = vadd.s32 %v189, 536870912
    %v191 = vshrl.u32 %v190, 30
    %v192 = vshll.u32 %v191, 30
    %v193 = vsub.s32 %v189, %v192
    %vm194 = vcmp.lt.s32.totalorder %v193, 0
    %v195 = vsub.s32 0, %v193
    %v196 = vsel %vm194, %v195, %v193
    %v197 = vclz %v196
    %v198 = vsub.s32 %v197, 2
    %vm199 = vcmp.gt.s32.totalorder 0, %v198
    %v200 = vsel %vm199, 0, %v198
    %v201 = vsub.s32 32, %v200
    %v202 = vshll.u32 %v193, %v200
    %v203 = vshrl.u32 %v185, %v201
    %v204 = vor.u32 %v202, %v203
    %v205 = vsub.s32 4294967266, %v200
    %v206 = vadd.s32 %v205, 127
    %v207 = vshll.u32 %v206, 23
    %v208 = vor.u32 4788187, %v207
    %v209 = vand.u32 2147483647, %v208
    %v211 = vcvt.s32.f32 %v204
    %v212 = vmul.f32 %v211, %v209
    %v213 = vxor.u32 %v212, 2147483648
    %v214 = vsel %vm131, %v213, %v212
    %v215 = vsub.s32 4, %v191
    %v216 = vsel %vm131, %v215, %v191
    %v217 = vsel %vm130, %v23, %v214
    %v218 = vsel %vm130, 0, %v216
    %v219 = vcosq.f32.pop %v217
    %v220 = vsinq.f32.pop %v217
    %vm221 = vweird.f32 %v23
    %v222 = vand.u32 %v218, 3
    %vm223 = vcmp.lt.s32.totalorder %v222, 2
    %vm224 = vcmp.eq.s32.totalorder %v222, 0
    %v225 = vxor.u32 %v220, 2147483648
    %v226 = vsel %vm224, %v219, %v225
    %vm227 = vcmp.eq.s32.totalorder %v222, 2
    %v228 = vxor.u32 %v219, 2147483648
    %v229 = vsel %vm227, %v228, %v220
    %v230 = vsel %vm223, %v226, %v229
    %v231 = vsel %vm221, nan, %v230
    %232 = vst [vmem:[#allocation2 + $0x8] sm:$0xff] %v231
    // Predicated region
    $region6: #{tpu_custom_call.1} parent=1 // pred_check
      _
    $region7: #{tpu_custom_call.1} parent=1 // pred_check_branch
      %234 = sbr.rel (0) target = $region9
    $region8: #{tpu_custom_call.1} parent=1 // pred_region
      %s236 = ssub.s32 256, 256
      %237 = vsyncadd [#allocation3], %s236
      %s239 = sshll.u32 [#allocation2], 4
      %s240 = int_to_ptr.vmem [resolvable:$true] %s239
      %242 = dma.vmem_to_hbm [thread:$0]  %s240, 256, %s1, [#allocation3]
    $region9: #{tpu_custom_call.1} parent=1 // pred_fallthru
      _
    // Predicated region
    $region10: #{tpu_custom_call.1} parent=1 // pred_check
      _
    $region11: #{tpu_custom_call.1} parent=1 // pred_check_branch
      %244 = sbr.rel (0) target = $region13
    $region12: #{tpu_custom_call.1} parent=1 // pred_region
      %245 = dma.done [#allocation3], 256
    $region13: #{tpu_custom_call.1} parent=1 // pred_fallthru
      _
    %246 = vsyncpa [#allocation3], 1

</llo_original>
